<compile_context>
chip_gen: v5e
topology: v5e:2x2
jax: 0.10.0
libtpu: 0.0.40
codegen_flags: <defaults>
</compile_context>

<pallas_src>
import functools

import jax
import jax.numpy as jnp
from jax.experimental import pallas as pl
from jax.experimental.pallas import tpu as pltpu


def _round_up(v, m):
    return ((v + m - 1) // m) * m


def _ipow(v, p):
    """v**p; integer exponents become repeated VPU multiplies (no exp/log)."""
    if float(p).is_integer():
        n = int(p)
        if n == 0:
            return jnp.ones_like(v)
        out = v
        for _ in range(n - 1):
            out = out * v
        return out
    return jnp.power(v, p)


def _focal_dice_kernel(x_ref, t_ref, o_ref, *, p_pos, p_neg, clip_pos, clip_neg,
                       n_valid, block_cols, mask_cols):
    j = pl.program_id(1)

    # o_ref is a (block_rows, 4) accumulator resident across the feature axis.
    @pl.when(j == 0)
    def _():
        o_ref[...] = jnp.zeros_like(o_ref)

    x = x_ref[...].astype(jnp.float32)
    t = t_ref[...].astype(jnp.float32)

    predict = jax.nn.sigmoid(x)

    # positive branch
    pp = predict
    if clip_pos is not None and clip_pos >= 0:
        m_pos = jnp.minimum(predict + clip_pos, 1.0)
        pp = m_pos * predict

    # negative branch
    xs_neg = 1.0 - predict
    pn = xs_neg
    if clip_neg is not None and clip_neg >= 0:
        m_neg = jnp.minimum(xs_neg + clip_neg, 1.0)
        pn = m_neg * xs_neg

    t_neg = 1.0 - t

    num_pos_t = pp * t
    den_pos_t = _ipow(pp, p_pos) + _ipow(t, p_pos)
    num_neg_t = pn * t_neg
    den_neg_t = _ipow(pn, p_neg) + _ipow(t_neg, p_neg)

    if mask_cols:
        col = jax.lax.broadcasted_iota(jnp.int32, x.shape, 1) + j * block_cols
        valid = (col < n_valid).astype(jnp.float32)
        num_pos_t = num_pos_t * valid
        den_pos_t = den_pos_t * valid
        num_neg_t = num_neg_t * valid
        den_neg_t = den_neg_t * valid

    partial = jnp.concatenate(
        [jnp.sum(num_pos_t, axis=-1, keepdims=True),
         jnp.sum(den_pos_t, axis=-1, keepdims=True),
         jnp.sum(num_neg_t, axis=-1, keepdims=True),
         jnp.sum(den_neg_t, axis=-1, keepdims=True)],
        axis=-1)
    o_ref[...] += partial


def focal_dice_loss(x, target, *, p_pos=2, p_neg=2, clip_pos=0.7, clip_neg=0.5,
                    pos_weight=0.3, reduction="mean",
                    block_rows=256, block_cols=2048):
    """FocalDiceLoss.forward: x = logits (B, ...), target same shape (multi-hot)."""
    assert x.shape[0] == target.shape[0], "predict & target batch size don't match"
    B = x.shape[0]
    xf = x.reshape(B, -1)
    tf = target.reshape(B, -1)
    N = xf.shape[1]

    br = min(block_rows, _round_up(B, 8))     # sublane-aligned row block
    bc = min(block_cols, _round_up(N, 128))   # lane-aligned feature block
    B_pad = _round_up(B, br)
    N_pad = _round_up(N, bc)

    if (B_pad, N_pad) != (B, N):
        xf = jnp.pad(xf, ((0, B_pad - B), (0, N_pad - N)))
        tf = jnp.pad(tf, ((0, B_pad - B), (0, N_pad - N)))

    kernel = functools.partial(
        _focal_dice_kernel, p_pos=p_pos, p_neg=p_neg,
        clip_pos=clip_pos, clip_neg=clip_neg,
        n_valid=N, block_cols=bc, mask_cols=(N_pad != N))

    grid = (B_pad // br, N_pad // bc)
    sums = pl.pallas_call(
        kernel,
        out_shape=jax.ShapeDtypeStruct((B_pad, 4), jnp.float32),
        grid_spec=pltpu.PrefetchScalarGridSpec(
            num_scalar_prefetch=0,
            grid=grid,
            in_specs=[
                pl.BlockSpec((br, bc), lambda i, j: (i, j)),
                pl.BlockSpec((br, bc), lambda i, j: (i, j)),
            ],
            out_specs=pl.BlockSpec((br, 4), lambda i, j: (i, 0)),
        ),
        compiler_params=pltpu.CompilerParams(
            dimension_semantics=("parallel", "arbitrary"),
        ),
    )(xf, tf)

    sums = sums[:B]
    num_pos = sums[:, 0]
    den_pos = sums[:, 1]
    num_neg = sums[:, 2]
    den_neg = sums[:, 3]

    loss_pos = 1.0 - 2.0 * num_pos / den_pos
    loss_neg = 1.0 - 2.0 * num_neg / den_neg
    loss = loss_pos * pos_weight + loss_neg * (1.0 - pos_weight)

    if reduction == "mean":
        return loss.mean()
    elif reduction == "sum":
        return loss.sum()
    elif reduction == "none":
        return loss
    else:
        raise Exception("Unexpected reduction {}".format(reduction))


def _reference(x, target, p_pos=2, p_neg=2, clip_pos=0.7, clip_neg=0.5,
               pos_weight=0.3, reduction="mean"):
    B = x.shape[0]
    predict = jax.nn.sigmoid(x).reshape(B, -1)
    t = target.reshape(B, -1)
    pp = predict
    if clip_pos is not None and clip_pos >= 0:
        pp = jnp.minimum(predict + clip_pos, 1.0) * predict
    num_pos = jnp.sum(pp * t, axis=1)
    den_pos = jnp.sum(pp ** p_pos + t ** p_pos, axis=1)
    xs_neg = 1.0 - predict
    pn = xs_neg
    if clip_neg is not None and clip_neg >= 0:
        pn = jnp.minimum(xs_neg + clip_neg, 1.0) * xs_neg
    num_neg = jnp.sum(pn * (1.0 - t), axis=1)
    den_neg = jnp.sum(pn ** p_neg + (1.0 - t) ** p_neg, axis=1)
    loss_pos = 1.0 - 2.0 * num_pos / den_pos
    loss_neg = 1.0 - 2.0 * num_neg / den_neg
    loss = loss_pos * pos_weight + loss_neg * (1.0 - pos_weight)
    if reduction == "mean":
        return loss.mean()
    if reduction == "sum":
        return loss.sum()
    return loss


if __name__ == "__main__":
    key = jax.random.PRNGKey(0)
    kx, ky = jax.random.split(key)
    B, C, H, W = 2, 4, 16, 16
    x = jax.random.normal(kx, (B, C, H, W), dtype=jnp.float32)
    t = (jax.random.uniform(ky, (B, C, H, W)) > 0.7).astype(jnp.float32)

    out = focal_dice_loss(x, t)
    out = jax.block_until_ready(out)

    ref = _reference(x, t)
    assert jnp.allclose(out, ref, atol=1e-5, rtol=1e-5), (out, ref)
    print("KERNEL_OK")
</pallas_src>

<mosaic_0001>
module attributes {stable_mosaic.version = 11 : i64} {
  func.func @_focal_dice_kernel(%arg0: i32, %arg1: i32, %arg2: memref<8x1024xf32, #tpu.memory_space<vmem>>, %arg3: memref<8x1024xf32, #tpu.memory_space<vmem>>, %arg4: memref<8x4xf32, #tpu.memory_space<vmem>>) attributes {dimension_semantics = [#tpu.dimension_semantics<parallel>, #tpu.dimension_semantics<arbitrary>], iteration_bounds = array<i64: 1, 1>, scalar_prefetch = 0 : i64, scratch_operands = 0 : i64, tpu.core_type = #tpu.core_type<tc>, window_params = [{transform_indices = @transform_0, window_bounds = array<i64: 8, 1024>}, {transform_indices = @transform_1, window_bounds = array<i64: 8, 1024>}, {transform_indices = @transform_2, window_bounds = array<i64: 8, 4>}]} {
    %c0_i32 = arith.constant 0 : i32
    %0 = arith.cmpi eq, %arg1, %c0_i32 : i32
    %1 = arith.extui %0 : i1 to i32
    %c0_i32_0 = arith.constant 0 : i32
    %2 = arith.cmpi ne, %1, %c0_i32_0 : i32
    scf.if %2 {
      %cst_18 = arith.constant 0.000000e+00 : f32
      %44 = vector.broadcast %cst_18 : f32 to vector<8x4xf32>
      %c0_19 = arith.constant 0 : index
      %c0_20 = arith.constant 0 : index
      %45 = vector.load %arg4[%c0_19, %c0_20] : memref<8x4xf32, #tpu.memory_space<vmem>>, vector<8x4xf32>
      tpu.vector_store %arg4[%c0_19, %c0_20], %44 {strides = array<i32>} : memref<8x4xf32, #tpu.memory_space<vmem>>, vector<8x4xf32>,
    } else {
    }
    %c0 = arith.constant 0 : index
    %c0_1 = arith.constant 0 : index
    %3 = vector.load %arg2[%c0, %c0_1] : memref<8x1024xf32, #tpu.memory_space<vmem>>, vector<8x1024xf32>
    %c0_2 = arith.constant 0 : index
    %c0_3 = arith.constant 0 : index
    %4 = vector.load %arg3[%c0_2, %c0_3] : memref<8x1024xf32, #tpu.memory_space<vmem>>, vector<8x1024xf32>
    %5 = arith.negf %3 : vector<8x1024xf32>
    %6 = math.exp %5 : vector<8x1024xf32>
    %cst = arith.constant 1.000000e+00 : f32
    %7 = vector.broadcast %cst : f32 to vector<8x1024xf32>
    %8 = arith.addf %7, %6 : vector<8x1024xf32>
    %9 = arith.divf %7, %8 : vector<8x1024xf32>
    %cst_4 = arith.constant 0.699999988 : f32
    %10 = vector.broadcast %cst_4 : f32 to vector<8x1024xf32>
    %11 = arith.addf %9, %10 : vector<8x1024xf32>
    %cst_5 = arith.constant 1.000000e+00 : f32
    %12 = vector.broadcast %cst_5 : f32 to vector<8x1024xf32>
    %13 = arith.minimumf %11, %12 : vector<8x1024xf32>
    %14 = arith.mulf %13, %9 : vector<8x1024xf32>
    %cst_6 = arith.constant 1.000000e+00 : f32
    %15 = vector.broadcast %cst_6 : f32 to vector<8x1024xf32>
    %16 = arith.subf %15, %9 : vector<8x1024xf32>
    %cst_7 = arith.constant 5.000000e-01 : f32
    %17 = vector.broadcast %cst_7 : f32 to vector<8x1024xf32>
    %18 = arith.addf %16, %17 : vector<8x1024xf32>
    %cst_8 = arith.constant 1.000000e+00 : f32
    %19 = vector.broadcast %cst_8 : f32 to vector<8x1024xf32>
    %20 = arith.minimumf %18, %19 : vector<8x1024xf32>
    %21 = arith.mulf %20, %16 : vector<8x1024xf32>
    %cst_9 = arith.constant 1.000000e+00 : f32
    %22 = vector.broadcast %cst_9 : f32 to vector<8x1024xf32>
    %23 = arith.subf %22, %4 : vector<8x1024xf32>
    %24 = arith.mulf %14, %4 : vector<8x1024xf32>
    %25 = arith.mulf %14, %14 : vector<8x1024xf32>
    %26 = arith.mulf %4, %4 : vector<8x1024xf32>
    %27 = arith.addf %25, %26 : vector<8x1024xf32>
    %28 = arith.mulf %21, %23 : vector<8x1024xf32>
    %29 = arith.mulf %21, %21 : vector<8x1024xf32>
    %30 = arith.mulf %23, %23 : vector<8x1024xf32>
    %31 = arith.addf %29, %30 : vector<8x1024xf32>
    %cst_10 = arith.constant dense<0.000000e+00> : vector<8xf32>
    %32 = vector.multi_reduction <add>, %24, %cst_10 [1] : vector<8x1024xf32> to vector<8xf32>
    %33 = vector.shape_cast %32 : vector<8xf32> to vector<8x1xf32>
    %cst_11 = arith.constant dense<0.000000e+00> : vector<8xf32>
    %34 = vector.multi_reduction <add>, %27, %cst_11 [1] : vector<8x1024xf32> to vector<8xf32>
    %35 = vector.shape_cast %34 : vector<8xf32> to vector<8x1xf32>
    %cst_12 = arith.constant dense<0.000000e+00> : vector<8xf32>
    %36 = vector.multi_reduction <add>, %28, %cst_12 [1] : vector<8x1024xf32> to vector<8xf32>
    %37 = vector.shape_cast %36 : vector<8xf32> to vector<8x1xf32>
    %cst_13 = arith.constant dense<0.000000e+00> : vector<8xf32>
    %38 = vector.multi_reduction <add>, %31, %cst_13 [1] : vector<8x1024xf32> to vector<8xf32>
    %39 = vector.shape_cast %38 : vector<8xf32> to vector<8x1xf32>
    %40 = tpu.concatenate %33, %35, %37, %39 in 1 : vector<8x1xf32>, vector<8x1xf32>, vector<8x1xf32>, vector<8x1xf32> -> vector<8x4xf32>
    %c0_14 = arith.constant 0 : index
    %c0_15 = arith.constant 0 : index
    %41 = vector.load %arg4[%c0_14, %c0_15] : memref<8x4xf32, #tpu.memory_space<vmem>>, vector<8x4xf32>
    %42 = arith.addf %41, %40 : vector<8x4xf32>
    %c0_16 = arith.constant 0 : index
    %c0_17 = arith.constant 0 : index
    %43 = vector.load %arg4[%c0_16, %c0_17] : memref<8x4xf32, #tpu.memory_space<vmem>>, vector<8x4xf32>
    tpu.vector_store %arg4[%c0_16, %c0_17], %42 {strides = array<i32>} : memref<8x4xf32, #tpu.memory_space<vmem>>, vector<8x4xf32>,
    return
  }
  func.func @transform_0(%arg0: i32, %arg1: i32) -> (i32, i32) {
    %c0_i32 = arith.constant 0 : i32
    return %arg0, %arg1 : i32, i32
  }
  func.func @transform_1(%arg0: i32, %arg1: i32) -> (i32, i32) {
    %c0_i32 = arith.constant 0 : i32
    return %arg0, %arg1 : i32, i32
  }
  func.func @transform_2(%arg0: i32, %arg1: i32) -> (i32, i32) {
    %c0_i32 = arith.constant 0 : i32
    %c0_i32_0 = arith.constant 0 : i32
    return %arg0, %c0_i32 : i32, i32
  }
}

</mosaic_0001>

<llo_original>
// kernel: tpu_custom_call.1
$region0: #{tpu_custom_call.1}
  #allocation0 [shape = 'u32[]', space=smem, size = 0x4, offset = 0x4, fixed_abs, tag = 'smem constant byte address 0x4 - core index']
  #allocation1 [shape = 'u32[72,128]{1,0:T(1,128)}', space=vmem, size = 0x9000, scoped, tag = 'internal scratch']
  %s0 = inlined_call_operand.hbm [shape: f32[8,1024], index: 0, kind: input, shape index: {}]
  %s1 = inlined_call_operand.hbm [shape: f32[8,1024], index: 1, kind: input, shape index: {}]
  %s2 = inlined_call_operand.vmem [shape: f32[8,4], index: 2, kind: output, shape index: {}]
  %s3 = sld [smem:[#allocation0]]
  $region30: #{tpu_custom_call.1} parent=0
    _
  %s5 = ssub.s32 1, %s3
  %s6 = scalar_select 0, %s5, %s3
  $region1: #{tpu_custom_call.1} parent=0
    #allocation2 [shape = 'u8[32768]{0}', space=vmem, size = 0x8000, scoped, tag = 'input window, operand 0, single buffered']
    #allocation3 [shape = 's32[1]{0}', space=sflag, size = 0x4, scoped, tag = 'scoped memory for tpu_custom_call.1']
    #allocation4 [shape = 'u8[32768]{0}', space=vmem, size = 0x8000, scoped, tag = 'input window, operand 1, single buffered']
    #allocation5 [shape = 's32[1]{0}', space=sflag, size = 0x4, scoped, tag = 'scoped memory for tpu_custom_call.1']
    %7 = vsyncpa [#allocation3], 0
    %8 = vsyncpa [#allocation5], 0
    // Predicated region
    $region2: #{tpu_custom_call.1} parent=1 // pred_check
      _
    $region3: #{tpu_custom_call.1} parent=1 // pred_check_branch
      %10 = sbr.rel (0) target = $region5
    $region4: #{tpu_custom_call.1} parent=1 // pred_region
      %12 = vsyncadd [#allocation3], 0
      %s14 = sshll.u32 %s0, 4
      %s15 = int_to_ptr.hbm [resolvable:$true] %s14
      %s16 = sshll.u32 [#allocation2], 4
      %s17 = int_to_ptr.vmem [resolvable:$true] %s16
      %19 = dma.hbm_to_vmem [thread:$0]  %s15, 1024, %s17, [#allocation3]
    $region5: #{tpu_custom_call.1} parent=1 // pred_fallthru
      _
    // Predicated region
    $region6: #{tpu_custom_call.1} parent=1 // pred_check
      _
    $region7: #{tpu_custom_call.1} parent=1 // pred_check_branch
      %21 = sbr.rel (0) target = $region9
    $region8: #{tpu_custom_call.1} parent=1 // pred_region
      %23 = vsyncadd [#allocation5], 0
      %s25 = sshll.u32 %s1, 4
      %s26 = int_to_ptr.hbm [resolvable:$true] %s25
      %s27 = sshll.u32 [#allocation4], 4
      %s28 = int_to_ptr.vmem [resolvable:$true] %s27
      %30 = dma.hbm_to_vmem [thread:$0]  %s26, 1024, %s28, [#allocation5]
    $region9: #{tpu_custom_call.1} parent=1 // pred_fallthru
      _
    // Predicated region
    $region10: #{tpu_custom_call.1} parent=1 // pred_check
      _
    $region11: #{tpu_custom_call.1} parent=1 // pred_check_branch
      %32 = sbr.rel (0) target = $region13
    $region12: #{tpu_custom_call.1} parent=1 // pred_region
      %34 = dma.done [#allocation3], 1024
    $region13: #{tpu_custom_call.1} parent=1 // pred_fallthru
      _
    // Predicated region
    $region14: #{tpu_custom_call.1} parent=1 // pred_check
      _
    $region15: #{tpu_custom_call.1} parent=1 // pred_check_branch
      %36 = sbr.rel (0) target = $region17
    $region16: #{tpu_custom_call.1} parent=1 // pred_region
      %38 = dma.done [#allocation5], 1024
    $region17: #{tpu_custom_call.1} parent=1 // pred_fallthru
      _
    %p39 = scmp.eq.s32.totalorder 0, 0
    // Predicated region
    $region18: #{tpu_custom_call.1} parent=1 // pred_check
      %p40 = pneg %p39
    $region19: #{tpu_custom_call.1} parent=1 // pred_check_branch
      %42 = sbr.rel (%p40) target = $region21
    $region20: #{tpu_custom_call.1} parent=1 // pred_region
      %vm43 = vcmask 31744
      %44 = vst.msk [vmem:[%s2] sm:$0xff] %vm43, 0.0
    $region21: #{tpu_custom_call.1} parent=1 // pred_fallthru
      _
    %v45 = vld [vmem:[#allocation2] sm:$0xff]
    %v46 = vld [vmem:[#allocation2 + $0x8] sm:$0xff]
    %v47 = vld [vmem:[#allocation2 + $0x10] sm:$0xff]
    %v48 = vld [vmem:[#allocation2 + $0x18] sm:$0xff]
    %v49 = vld [vmem:[#allocation2 + $0x20] sm:$0xff]
    %v50 = vld [vmem:[#allocation2 + $0x28] sm:$0xff]
    %v51 = vld [vmem:[#allocation2 + $0x30] sm:$0xff]
    %v52 = vld [vmem:[#allocation2 + $0x38] sm:$0xff]
    %v53 = vld [vmem:[#allocation4] sm:$0xff]
    %v54 = vld [vmem:[#allocation4 + $0x8] sm:$0xff]
    %v55 = vld [vmem:[#allocation4 + $0x10] sm:$0xff]
    %v56 = vld [vmem:[#allocation4 + $0x18] sm:$0xff]
    %v57 = vld [vmem:[#allocation4 + $0x20] sm:$0xff]
    %v58 = vld [vmem:[#allocation4 + $0x28] sm:$0xff]
    %v59 = vld [vmem:[#allocation4 + $0x30] sm:$0xff]
    %v60 = vld [vmem:[#allocation4 + $0x38] sm:$0xff]
    %v61 = vxor.u32 %v45, 2147483648
    %v62 = vxor.u32 %v46, 2147483648
    %v63 = vxor.u32 %v47, 2147483648
    %v64 = vxor.u32 %v48, 2147483648
    %v65 = vxor.u32 %v49, 2147483648
    %v66 = vxor.u32 %v50, 2147483648
    %v67 = vxor.u32 %v51, 2147483648
    %v68 = vxor.u32 %v52, 2147483648
    %v69 = vmul.f32 %v61, 1.442695
    %v70 = vpow.pop %v69
    %v71 = vmul.f32 %v62, 1.442695
    %v72 = vpow.pop %v71
    %v73 = vmul.f32 %v63, 1.442695
    %v74 = vpow.pop %v73
    %v75 = vmul.f32 %v64, 1.442695
    %v76 = vpow.pop %v75
    %v77 = vmul.f32 %v65, 1.442695
    %v78 = vpow.pop %v77
    %v79 = vmul.f32 %v66, 1.442695
    %v80 = vpow.pop %v79
    %v81 = vmul.f32 %v67, 1.442695
    %v82 = vpow.pop %v81
    %v83 = vmul.f32 %v68, 1.442695
    %v84 = vpow.pop %v83
    %v85 = vadd.f32 %v70, 1.0
    %v86 = vadd.f32 %v72, 1.0
    %v87 = vadd.f32 %v74, 1.0
    %v88 = vadd.f32 %v76, 1.0
    %v89 = vadd.f32 %v78, 1.0
    %v90 = vadd.f32 %v80, 1.0
    %v91 = vadd.f32 %v82, 1.0
    %v92 = vadd.f32 %v84, 1.0
    %v93 = vrcp.pop %v85
    %v94 = vmul.f32 %v85, %v93
    %v95 = vsub.f32 1.0, %v94
    %v96 = vmul.f32 %v93, %v95
    %v97 = vadd.f32 %v93, %v96
    %vm98 = vweird.f32 %v85
    %vm99 = vweird.f32 %v93
    %vm100 = vmor %vm98, %vm99
    %v101 = vsel %vm100, %v93, %v97
    %v102 = vand.u32 2147483647, %v85
    %vm103 = vcmp.eq.f32.partialorder %v102, 8.507059e+37
    %v104 = vand.u32 %v85, 2147483648
    %v105 = vor.u32 1.1754944e-38, %v104
    %v106 = vsel %vm103, %v105, %v101
    %v107 = vmul.f32 1.0, %v106
    %v108 = vrcp.pop %v86
    %v109 = vmul.f32 %v86, %v108
    %v110 = vsub.f32 1.0, %v109
    %v111 = vmul.f32 %v108, %v110
    %v112 = vadd.f32 %v108, %v111
    %vm113 = vweird.f32 %v86
    %vm114 = vweird.f32 %v108
    %vm115 = vmor %vm113, %vm114
    %v116 = vsel %vm115, %v108, %v112
    %v117 = vand.u32 2147483647, %v86
    %vm118 = vcmp.eq.f32.partialorder %v117, 8.507059e+37
    %v119 = vand.u32 %v86, 2147483648
    %v120 = vor.u32 1.1754944e-38, %v119
    %v121 = vsel %vm118, %v120, %v116
    %v122 = vmul.f32 1.0, %v121
    %v123 = vrcp.pop %v87
    %v124 = vmul.f32 %v87, %v123
    %v125 = vsub.f32 1.0, %v124
    %v126 = vmul.f32 %v123, %v125
    %v127 = vadd.f32 %v123, %v126
    %vm128 = vweird.f32 %v87
    %vm129 = vweird.f32 %v123
    %vm130 = vmor %vm128, %vm129
    %v131 = vsel %vm130, %v123, %v127
    %v132 = vand.u32 2147483647, %v87
    %vm133 = vcmp.eq.f32.partialorder %v132, 8.507059e+37
    %v134 = vand.u32 %v87, 2147483648
    %v135 = vor.u32 1.1754944e-38, %v134
    %v136 = vsel %vm133, %v135, %v131
    %v137 = vmul.f32 1.0, %v136
    %v138 = vrcp.pop %v88
    %v139 = vmul.f32 %v88, %v138
    %v140 = vsub.f32 1.0, %v139
    %v141 = vmul.f32 %v138, %v140
    %v142 = vadd.f32 %v138, %v141
    %vm143 = vweird.f32 %v88
    %vm144 = vweird.f32 %v138
    %vm145 = vmor %vm143, %vm144
    %v146 = vsel %vm145, %v138, %v142
    %v147 = vand.u32 2147483647, %v88
    %vm148 = vcmp.eq.f32.partialorder %v147, 8.507059e+37
    %v149 = vand.u32 %v88, 2147483648
    %v150 = vor.u32 1.1754944e-38, %v149
    %v151 = vsel %vm148, %v150, %v146
    %v152 = vmul.f32 1.0, %v151
    %v153 = vrcp.pop %v89
    %v154 = vmul.f32 %v89, %v153
    %v155 = vsub.f32 1.0, %v154
    %v156 = vmul.f32 %v153, %v155
    %v157 = vadd.f32 %v153, %v156
    %vm158 = vweird.f32 %v89
    %vm159 = vweird.f32 %v153
    %vm160 = vmor %vm158, %vm159
    %v161 = vsel %vm160, %v153, %v157
    %v162 = vand.u32 2147483647, %v89
    %vm163 = vcmp.eq.f32.partialorder %v162, 8.507059e+37
    %v164 = vand.u32 %v89, 2147483648
    %v165 = vor.u32 1.1754944e-38, %v164
    %v166 = vsel %vm163, %v165, %v161
    %v167 = vmul.f32 1.0, %v166
    %v168 = vrcp.pop %v90
    %v169 = vmul.f32 %v90, %v168
    %v170 = vsub.f32 1.0, %v169
    %v171 = vmul.f32 %v168, %v170
    %v172 = vadd.f32 %v168, %v171
    %vm173 = vweird.f32 %v90
    %vm174 = vweird.f32 %v168
    %vm175 = vmor %vm173, %vm174
    %v176 = vsel %vm175, %v168, %v172
    %v177 = vand.u32 2147483647, %v90
    %vm178 = vcmp.eq.f32.partialorder %v177, 8.507059e+37
    %v179 = vand.u32 %v90, 2147483648
    %v180 = vor.u32 1.1754944e-38, %v179
    %v181 = vsel %vm178, %v180, %v176
    %v182 = vmul.f32 1.0, %v181
    %v183 = vrcp.pop %v91
    %v184 = vmul.f32 %v91, %v183
    %v185 = vsub.f32 1.0, %v184
    %v186 = vmul.f32 %v183, %v185
    %v187 = vadd.f32 %v183, %v186
    %vm188 = vweird.f32 %v91
    %vm189 = vweird.f32 %v183
    %vm190 = vmor %vm188, %vm189
    %v191 = vsel %vm190, %v183, %v187
    %v192 = vand.u32 2147483647, %v91
    %vm193 = vcmp.eq.f32.partialorder %v192, 8.507059e+37
    %v194 = vand.u32 %v91, 2147483648
    %v195 = vor.u32 1.1754944e-38, %v194
    %v196 = vsel %vm193, %v195, %v191
    %v197 = vmul.f32 1.0, %v196
    %v198 = vrcp.pop %v92
    %v199 = vmul.f32 %v92, %v198
    %v200 = vsub.f32 1.0, %v199
    %v201 = vmul.f32 %v198, %v200
    %v202 = vadd.f32 %v198, %v201
    %vm203 = vweird.f32 %v92
    %vm204 = vweird.f32 %v198
    %vm205 = vmor %vm203, %vm204
    %v206 = vsel %vm205, %v198, %v202
    %v207 = vand.u32 2147483647, %v92
    %vm208 = vcmp.eq.f32.partialorder %v207, 8.507059e+37
    %v209 = vand.u32 %v92, 2147483648
    %v210 = vor.u32 1.1754944e-38, %v209
    %v211 = vsel %vm208, %v210, %v206
    %v212 = vmul.f32 1.0, %v211
    %v213 = vadd.f32 %v107, 0.7
    %v214 = vadd.f32 %v122, 0.7
    %v215 = vadd.f32 %v137, 0.7
    %v216 = vadd.f32 %v152, 0.7
    %v217 = vadd.f32 %v167, 0.7
    %v218 = vadd.f32 %v182, 0.7
    %v219 = vadd.f32 %v197, 0.7
    %v220 = vadd.f32 %v212, 0.7
    %v221 = vmin.f32 %v213, 1.0
    %v222 = vmin.f32 %v214, 1.0
    %v223 = vmin.f32 %v215, 1.0
    %v224 = vmin.f32 %v216, 1.0
    %v225 = vmin.f32 %v217, 1.0
    %v226 = vmin.f32 %v218, 1.0
    %v227 = vmin.f32 %v219, 1.0
    %v228 = vmin.f32 %v220, 1.0
    %v229 = vmul.f32 %v221, %v107
    %v230 = vmul.f32 %v222, %v122
    %v231 = vmul.f32 %v223, %v137
    %v232 = vmul.f32 %v224, %v152
    %v233 = vmul.f32 %v225, %v167
    %v234 = vmul.f32 %v226, %v182
    %v235 = vmul.f32 %v227, %v197
    %v236 = vmul.f32 %v228, %v212
    %v237 = vsub.f32 1.0, %v107
    %v238 = vsub.f32 1.0, %v122
    %v239 = vsub.f32 1.0, %v137
    %v240 = vsub.f32 1.0, %v152
    %v241 = vsub.f32 1.0, %v167
    %v242 = vsub.f32 1.0, %v182
    %v243 = vsub.f32 1.0, %v197
    %v244 = vsub.f32 1.0, %v212
    %v245 = vadd.f32 %v237, 0.5
    %v246 = vadd.f32 %v238, 0.5
    %v247 = vadd.f32 %v239, 0.5
    %v248 = vadd.f32 %v240, 0.5
    %v249 = vadd.f32 %v241, 0.5
    %v250 = vadd.f32 %v242, 0.5
    %v251 = vadd.f32 %v243, 0.5
    %v252 = vadd.f32 %v244, 0.5
    %v253 = vmin.f32 %v245, 1.0
    %v254 = vmin.f32 %v246, 1.0
    %v255 = vmin.f32 %v247, 1.0
    %v256 = vmin.f32 %v248, 1.0
    %v257 = vmin.f32 %v249, 1.0
    %v258 = vmin.f32 %v250, 1.0
    %v259 = vmin.f32 %v251, 1.0
    %v260 = vmin.f32 %v252, 1.0
    %v261 = vmul.f32 %v253, %v237
    %v262 = vmul.f32 %v254, %v238
    %v263 = vmul.f32 %v255, %v239
    %v264 = vmul.f32 %v256, %v240
    %v265 = vmul.f32 %v257, %v241
    %v266 = vmul.f32 %v258, %v242
    %v267 = vmul.f32 %v259, %v243
    %v268 = vmul.f32 %v260, %v244
    %v269 = vsub.f32 1.0, %v53
    %v270 = vsub.f32 1.0, %v54
    %v271 = vsub.f32 1.0, %v55
    %v272 = vsub.f32 1.0, %v56
    %v273 = vsub.f32 1.0, %v57
    %v274 = vsub.f32 1.0, %v58
    %v275 = vsub.f32 1.0, %v59
    %v276 = vsub.f32 1.0, %v60
    %v277 = vmul.f32 %v229, %v53
    %v278 = vmul.f32 %v230, %v54
    %v279 = vmul.f32 %v231, %v55
    %v280 = vmul.f32 %v232, %v56
    %v281 = vmul.f32 %v233, %v57
    %v282 = vmul.f32 %v234, %v58
    %v283 = vmul.f32 %v235, %v59
    %v284 = vmul.f32 %v236, %v60
    %v285 = vmul.f32 %v229, %v229
    %v286 = vmul.f32 %v230, %v230
    %v287 = vmul.f32 %v231, %v231
    %v288 = vmul.f32 %v232, %v232
    %v289 = vmul.f32 %v233, %v233
    %v290 = vmul.f32 %v234, %v234
    %v291 = vmul.f32 %v235, %v235
    %v292 = vmul.f32 %v236, %v236
    %v293 = vmul.f32 %v53, %v53
    %v294 = vmul.f32 %v54, %v54
    %v295 = vmul.f32 %v55, %v55
    %v296 = vmul.f32 %v56, %v56
    %v297 = vmul.f32 %v57, %v57
    %v298 = vmul.f32 %v58, %v58
    %v299 = vmul.f32 %v59, %v59
    %v300 = vmul.f32 %v60, %v60
    %v301 = vadd.f32 %v285, %v293
    %v302 = vadd.f32 %v286, %v294
    %v303 = vadd.f32 %v287, %v295
    %v304 = vadd.f32 %v288, %v296
    %v305 = vadd.f32 %v289, %v297
    %v306 = vadd.f32 %v290, %v298
    %v307 = vadd.f32 %v291, %v299
    %v308 = vadd.f32 %v292, %v300
    %v309 = vmul.f32 %v261, %v269
    %v310 = vmul.f32 %v262, %v270
    %v311 = vmul.f32 %v263, %v271
    %v312 = vmul.f32 %v264, %v272
    %v313 = vmul.f32 %v265, %v273
    %v314 = vmul.f32 %v266, %v274
    %v315 = vmul.f32 %v267, %v275
    %v316 = vmul.f32 %v268, %v276
    %v317 = vmul.f32 %v261, %v261
    %v318 = vmul.f32 %v262, %v262
    %v319 = vmul.f32 %v263, %v263
    %v320 = vmul.f32 %v264, %v264
    %v321 = vmul.f32 %v265, %v265
    %v322 = vmul.f32 %v266, %v266
    %v323 = vmul.f32 %v267, %v267
    %v324 = vmul.f32 %v268, %v268
    %v325 = vmul.f32 %v269, %v269
    %v326 = vmul.f32 %v270, %v270
    %v327 = vmul.f32 %v271, %v271
    %v328 = vmul.f32 %v272, %v272
    %v329 = vmul.f32 %v273, %v273
    %v330 = vmul.f32 %v274, %v274
    %v331 = vmul.f32 %v275, %v275
    %v332 = vmul.f32 %v276, %v276
    %v333 = vadd.f32 %v317, %v325
    %v334 = vadd.f32 %v318, %v326
    %v335 = vadd.f32 %v319, %v327
    %v336 = vadd.f32 %v320, %v328
    %v337 = vadd.f32 %v321, %v329
    %v338 = vadd.f32 %v322, %v330
    %v339 = vadd.f32 %v323, %v331
    %v340 = vadd.f32 %v324, %v332
    %v341 = vadd.f32 %v277, %v278
    %v342 = vadd.f32 %v341, %v279
    %v343 = vadd.f32 %v342, %v280
    %v344 = vadd.f32 %v343, %v281
    %v345 = vadd.f32 %v344, %v282
    %v346 = vadd.f32 %v345, %v283
    %v347 = vadd.f32 %v346, %v284
    %348 = vadd.xlane.f32.xlu0 %v347
    %v349 = vpop.xlane.xlu0 %348
    %v350 = vadd.f32 %v301, %v302
    %v351 = vadd.f32 %v350, %v303
    %v352 = vadd.f32 %v351, %v304
    %v353 = vadd.f32 %v352, %v305
    %v354 = vadd.f32 %v353, %v306
    %v355 = vadd.f32 %v354, %v307
    %v356 = vadd.f32 %v355, %v308
    %357 = vadd.xlane.f32.xlu0 %v356
    %v358 = vpop.xlane.xlu0 %357
    %v359 = vadd.f32 %v309, %v310
    %v360 = vadd.f32 %v359, %v311
    %v361 = vadd.f32 %v360, %v312
    %v362 = vadd.f32 %v361, %v313
    %v363 = vadd.f32 %v362, %v314
    %v364 = vadd.f32 %v363, %v315
    %v365 = vadd.f32 %v364, %v316
    %366 = vadd.xlane.f32.xlu0 %v365
    %v367 = vpop.xlane.xlu0 %366
    %v368 = vadd.f32 %v333, %v334
    %v369 = vadd.f32 %v368, %v335
    %v370 = vadd.f32 %v369, %v336
    %v371 = vadd.f32 %v370, %v337
    %v372 = vadd.f32 %v371, %v338
    %v373 = vadd.f32 %v372, %v339
    %v374 = vadd.f32 %v373, %v340
    %375 = vadd.xlane.f32.xlu0 %v374
    %v376 = vpop.xlane.xlu0 %375
    %vm377 = vcmask 7168
    %v378 = vsel %vm377, %v349, %v358
    %vm379 = vcmask 15360
    %v380 = vsel %vm379, %v378, %v367
    %vm381 = vcmask 23552
    %v382 = vsel %vm381, %v380, %v376
    %v383 = vld [vmem:[%s2] sm:$0xff]
    %v384 = vadd.f32 %v383, %v382
    %vm385 = vcmask 31744
    %386 = vst.msk [vmem:[%s2] sm:$0xff] %vm385, %v384
    // Predicated region
    $region22: #{tpu_custom_call.1} parent=1 // pred_check
      _
    $region23: #{tpu_custom_call.1} parent=1 // pred_check_branch
      %388 = sbr.rel (0) target = $region25
    $region24: #{tpu_custom_call.1} parent=1 // pred_region
      _
    $region25: #{tpu_custom_call.1} parent=1 // pred_fallthru
      _
    // Predicated region
    $region26: #{tpu_custom_call.1} parent=1 // pred_check
      _
    $region27: #{tpu_custom_call.1} parent=1 // pred_check_branch
      %390 = sbr.rel (0) target = $region29
    $region28: #{tpu_custom_call.1} parent=1 // pred_region
      _
    $region29: #{tpu_custom_call.1} parent=1 // pred_fallthru
      _
    %391 = vsyncpa [#allocation3], 1
    %392 = vsyncpa [#allocation5], 1

</llo_original>
